<compile_context>
chip_gen: v5e
topology: v5e:2x2
jax: 0.10.0
libtpu: 0.0.40
codegen_flags: <defaults>
</compile_context>

<pallas_src>
import functools

import jax
import jax.numpy as jnp
from jax.experimental import pallas as pl
from jax.experimental.pallas import tpu as pltpu


TB_MAX = 512  # max batch-tile rows (keeps per-step overhead amortized, VMEM tiny)


def _round_up(n, m):
    return ((n + m - 1) // m) * m


def mlp_kernel(x_ref,
               w1_ref, b1_ref,
               w2_ref, b2_ref,
               w3_ref, b3_ref,
               w4_ref, b4_ref,
               o_ref):
    # Layer 1: (TB,F)bf16 @ (F,128)bf16 -> f32 acc, bias+ReLU in f32
    h = jnp.dot(x_ref[...], w1_ref[...], preferred_element_type=jnp.float32)
    h = jnp.maximum(h + b1_ref[...], 0.0)
    # Layer 2: feed the MXU bf16 activations, accumulate f32
    h = jnp.dot(h.astype(jnp.bfloat16), w2_ref[...],
                preferred_element_type=jnp.float32)
    h = jnp.maximum(h + b2_ref[...], 0.0)
    # Layer 3
    h = jnp.dot(h.astype(jnp.bfloat16), w3_ref[...],
                preferred_element_type=jnp.float32)
    h = jnp.maximum(h + b3_ref[...], 0.0)
    # Layer 4 (no activation); lane-dense (TB, T_pad) store
    h = jnp.dot(h.astype(jnp.bfloat16), w4_ref[...],
                preferred_element_type=jnp.float32)
    o_ref[...] = (h + b4_ref[...]).astype(o_ref.dtype)


@functools.partial(jax.jit, static_argnames=())
def neural_network_forward(x, params):
    """x: (B, feature_num) float32; params: dict W1..W4 (in,out), b1..b4 (1,out)."""
    B, F = x.shape
    T = params["W4"].shape[1]
    T_pad = _round_up(T, 128)          # lane-dense output width

    # Batch tile: big streaming tile, but no larger than the (8-aligned) batch.
    TB = min(TB_MAX, _round_up(B, 8))
    Bp = _round_up(B, TB)
    xp = x if Bp == B else jnp.pad(x, ((0, Bp - B), (0, 0)))

    # bf16 inputs/weights: halves dominant HBM read traffic, 2x MXU rate on
    # v6e/v7x. Biases stay f32 (elementwise math in f32).
    xp = xp.astype(jnp.bfloat16)
    w1 = params["W1"].astype(jnp.bfloat16)
    w2 = params["W2"].astype(jnp.bfloat16)
    w3 = params["W3"].astype(jnp.bfloat16)
    # Zero-pad last layer's out-dim to a multiple of 128 (lane-dense stores).
    w4 = jnp.zeros((params["W4"].shape[0], T_pad), jnp.bfloat16
                   ).at[:, :T].set(params["W4"].astype(jnp.bfloat16))
    b1, b2, b3 = params["b1"], params["b2"], params["b3"]
    b4 = jnp.zeros((1, T_pad), jnp.float32).at[:, :T].set(params["b4"])

    H1, H2, H3 = w1.shape[1], w2.shape[1], w3.shape[1]   # 128, 64, 32

    grid = (Bp // TB,)

    # x / out stream per batch tile; weights & biases resident (same block
    # index every grid step -> no re-DMA).
    in_specs = [
        pl.BlockSpec((TB, F), lambda i: (i, 0)),          # x
        pl.BlockSpec((F, H1), lambda i: (0, 0)),          # W1
        pl.BlockSpec((1, H1), lambda i: (0, 0)),          # b1
        pl.BlockSpec((H1, H2), lambda i: (0, 0)),         # W2
        pl.BlockSpec((1, H2), lambda i: (0, 0)),          # b2
        pl.BlockSpec((H2, H3), lambda i: (0, 0)),         # W3
        pl.BlockSpec((1, H3), lambda i: (0, 0)),          # b3
        pl.BlockSpec((H3, T_pad), lambda i: (0, 0)),      # W4 (padded)
        pl.BlockSpec((1, T_pad), lambda i: (0, 0)),       # b4 (padded)
    ]
    out_spec = pl.BlockSpec((TB, T_pad), lambda i: (i, 0))

    flops = 2 * Bp * (F * H1 + H1 * H2 + H2 * H3 + H3 * T_pad)
    bytes_accessed = (
        xp.size * 2                                   # bf16 x read
        + (w1.size + w2.size + w3.size + w4.size) * 2  # bf16 weights
        + (b1.size + b2.size + b3.size + b4.size) * 4  # f32 biases
        + Bp * T_pad * 4                               # f32 output write
    )

    out_padded = pl.pallas_call(
        mlp_kernel,
        out_shape=jax.ShapeDtypeStruct((Bp, T_pad), jnp.float32),
        grid=grid,
        in_specs=in_specs,
        out_specs=out_spec,
        compiler_params=pltpu.CompilerParams(
            dimension_semantics=("parallel",)),
        cost_estimate=pl.CostEstimate(
            flops=flops, bytes_accessed=bytes_accessed, transcendentals=0),
    )(xp, w1, b1, w2, b2, w3, b3, w4, b4)

    return out_padded[:B, :T]


def init_params(key, feature_num, target_num):
    """Deterministic synthetic init (uniform, PyTorch-like fan-in scaling)."""
    dims = [feature_num, 128, 64, 32, target_num]
    params = {}
    for i in range(4):
        key, kw, kb = jax.random.split(key, 3)
        bound = 1.0 / jnp.sqrt(dims[i])
        # Stored as (in, out) == PyTorch weight.T; biases kept 2D (1, out).
        params[f"W{i + 1}"] = jax.random.uniform(
            kw, (dims[i], dims[i + 1]), jnp.float32, -bound, bound)
        params[f"b{i + 1}"] = jax.random.uniform(
            kb, (1, dims[i + 1]), jnp.float32, -bound, bound)
    return params


def reference_forward(x, params):
    """Pure-JAX reference mirroring the kernel's mixed precision exactly
    (bf16 matmul operands, f32 accumulation, f32 bias/ReLU)."""
    h = x.astype(jnp.bfloat16)
    for i in (1, 2, 3):
        h = jnp.dot(h, params[f"W{i}"].astype(jnp.bfloat16),
                    preferred_element_type=jnp.float32)
        h = jnp.maximum(h + params[f"b{i}"], 0.0).astype(jnp.bfloat16)
    h = jnp.dot(h, params["W4"].astype(jnp.bfloat16),
                preferred_element_type=jnp.float32)
    return h + params["b4"]


if __name__ == "__main__":
    key = jax.random.PRNGKey(0)
    feature_num, target_num = 32, 8
    batch = 8

    k_params, k_x = jax.random.split(key)
    params = init_params(k_params, feature_num, target_num)
    x = jax.random.normal(k_x, (batch, feature_num), jnp.float32)

    out = neural_network_forward(x, params)
    out = jax.block_until_ready(out)

    ref = reference_forward(x, params)
    assert out.shape == (batch, target_num)
    assert jnp.allclose(out, ref, atol=1e-3, rtol=1e-3)

    print("KERNEL_OK")
</pallas_src>

<mosaic_0001>
module attributes {stable_mosaic.version = 11 : i64} {
  func.func @mlp_kernel(%arg0: i32, %arg1: memref<8x32xbf16, #tpu.memory_space<vmem>>, %arg2: memref<32x128xbf16, #tpu.memory_space<vmem>>, %arg3: memref<1x128xf32, #tpu.memory_space<vmem>>, %arg4: memref<128x64xbf16, #tpu.memory_space<vmem>>, %arg5: memref<1x64xf32, #tpu.memory_space<vmem>>, %arg6: memref<64x32xbf16, #tpu.memory_space<vmem>>, %arg7: memref<1x32xf32, #tpu.memory_space<vmem>>, %arg8: memref<32x128xbf16, #tpu.memory_space<vmem>>, %arg9: memref<1x128xf32, #tpu.memory_space<vmem>>, %arg10: memref<8x128xf32, #tpu.memory_space<vmem>>) attributes {dimension_semantics = [#tpu.dimension_semantics<parallel>], iteration_bounds = array<i64: 1>, scalar_prefetch = 0 : i64, scratch_operands = 0 : i64, tpu.core_type = #tpu.core_type<tc>, window_params = [{transform_indices = @transform_0, window_bounds = array<i64: 8, 32>}, {pipeline_mode = #tpu.pipeline_mode<synchronous>, transform_indices = @transform_1, window_bounds = array<i64: 32, 128>}, {pipeline_mode = #tpu.pipeline_mode<synchronous>, transform_indices = @transform_2, window_bounds = array<i64: 1, 128>}, {pipeline_mode = #tpu.pipeline_mode<synchronous>, transform_indices = @transform_3, window_bounds = array<i64: 128, 64>}, {pipeline_mode = #tpu.pipeline_mode<synchronous>, transform_indices = @transform_4, window_bounds = array<i64: 1, 64>}, {pipeline_mode = #tpu.pipeline_mode<synchronous>, transform_indices = @transform_5, window_bounds = array<i64: 64, 32>}, {pipeline_mode = #tpu.pipeline_mode<synchronous>, transform_indices = @transform_6, window_bounds = array<i64: 1, 32>}, {pipeline_mode = #tpu.pipeline_mode<synchronous>, transform_indices = @transform_7, window_bounds = array<i64: 32, 128>}, {pipeline_mode = #tpu.pipeline_mode<synchronous>, transform_indices = @transform_8, window_bounds = array<i64: 1, 128>}, {transform_indices = @transform_9, window_bounds = array<i64: 8, 128>}]} {
    %c0 = arith.constant 0 : index
    %c0_0 = arith.constant 0 : index
    %0 = vector.load %arg1[%c0, %c0_0] : memref<8x32xbf16, #tpu.memory_space<vmem>>, vector<8x32xbf16>
    %c0_1 = arith.constant 0 : index
    %c0_2 = arith.constant 0 : index
    %1 = vector.load %arg2[%c0_1, %c0_2] : memref<32x128xbf16, #tpu.memory_space<vmem>>, vector<32x128xbf16>
    %cst = arith.constant dense<0.000000e+00> : vector<8x128xf32>
    %2 = tpu.matmul %0, %1, %cst {dimension_numbers = #tpu.dot_dimension_numbers<[1], [0], [0], [1], [0, 0, 1, 1], [], []>} : vector<8x32xbf16>, vector<32x128xbf16>, vector<8x128xf32> -> vector<8x128xf32>
    %c0_3 = arith.constant 0 : index
    %c0_4 = arith.constant 0 : index
    %3 = vector.load %arg3[%c0_3, %c0_4] : memref<1x128xf32, #tpu.memory_space<vmem>>, vector<1x128xf32>
    %4 = vector.broadcast %3 : vector<1x128xf32> to vector<8x128xf32>
    %5 = arith.addf %2, %4 : vector<8x128xf32>
    %cst_5 = arith.constant 0.000000e+00 : f32
    %6 = vector.broadcast %cst_5 : f32 to vector<8x128xf32>
    %7 = arith.maximumf %5, %6 : vector<8x128xf32>
    %8 = arith.truncf %7 : vector<8x128xf32> to vector<8x128xbf16>
    %c0_6 = arith.constant 0 : index
    %c0_7 = arith.constant 0 : index
    %9 = vector.load %arg4[%c0_6, %c0_7] : memref<128x64xbf16, #tpu.memory_space<vmem>>, vector<128x64xbf16>
    %cst_8 = arith.constant dense<0.000000e+00> : vector<8x64xf32>
    %10 = tpu.matmul %8, %9, %cst_8 {dimension_numbers = #tpu.dot_dimension_numbers<[1], [0], [0], [1], [0, 0, 1, 1], [], []>} : vector<8x128xbf16>, vector<128x64xbf16>, vector<8x64xf32> -> vector<8x64xf32>
    %c0_9 = arith.constant 0 : index
    %c0_10 = arith.constant 0 : index
    %11 = vector.load %arg5[%c0_9, %c0_10] : memref<1x64xf32, #tpu.memory_space<vmem>>, vector<1x64xf32>
    %12 = vector.broadcast %11 : vector<1x64xf32> to vector<8x64xf32>
    %13 = arith.addf %10, %12 : vector<8x64xf32>
    %cst_11 = arith.constant 0.000000e+00 : f32
    %14 = vector.broadcast %cst_11 : f32 to vector<8x64xf32>
    %15 = arith.maximumf %13, %14 : vector<8x64xf32>
    %16 = arith.truncf %15 : vector<8x64xf32> to vector<8x64xbf16>
    %c0_12 = arith.constant 0 : index
    %c0_13 = arith.constant 0 : index
    %17 = vector.load %arg6[%c0_12, %c0_13] : memref<64x32xbf16, #tpu.memory_space<vmem>>, vector<64x32xbf16>
    %cst_14 = arith.constant dense<0.000000e+00> : vector<8x32xf32>
    %18 = tpu.matmul %16, %17, %cst_14 {dimension_numbers = #tpu.dot_dimension_numbers<[1], [0], [0], [1], [0, 0, 1, 1], [], []>} : vector<8x64xbf16>, vector<64x32xbf16>, vector<8x32xf32> -> vector<8x32xf32>
    %c0_15 = arith.constant 0 : index
    %c0_16 = arith.constant 0 : index
    %19 = vector.load %arg7[%c0_15, %c0_16] : memref<1x32xf32, #tpu.memory_space<vmem>>, vector<1x32xf32>
    %20 = vector.broadcast %19 : vector<1x32xf32> to vector<8x32xf32>
    %21 = arith.addf %18, %20 : vector<8x32xf32>
    %cst_17 = arith.constant 0.000000e+00 : f32
    %22 = vector.broadcast %cst_17 : f32 to vector<8x32xf32>
    %23 = arith.maximumf %21, %22 : vector<8x32xf32>
    %24 = arith.truncf %23 : vector<8x32xf32> to vector<8x32xbf16>
    %c0_18 = arith.constant 0 : index
    %c0_19 = arith.constant 0 : index
    %25 = vector.load %arg8[%c0_18, %c0_19] : memref<32x128xbf16, #tpu.memory_space<vmem>>, vector<32x128xbf16>
    %cst_20 = arith.constant dense<0.000000e+00> : vector<8x128xf32>
    %26 = tpu.matmul %24, %25, %cst_20 {dimension_numbers = #tpu.dot_dimension_numbers<[1], [0], [0], [1], [0, 0, 1, 1], [], []>} : vector<8x32xbf16>, vector<32x128xbf16>, vector<8x128xf32> -> vector<8x128xf32>
    %c0_21 = arith.constant 0 : index
    %c0_22 = arith.constant 0 : index
    %27 = vector.load %arg9[%c0_21, %c0_22] : memref<1x128xf32, #tpu.memory_space<vmem>>, vector<1x128xf32>
    %28 = vector.broadcast %27 : vector<1x128xf32> to vector<8x128xf32>
    %29 = arith.addf %26, %28 : vector<8x128xf32>
    %c0_23 = arith.constant 0 : index
    %c0_24 = arith.constant 0 : index
    %30 = vector.load %arg10[%c0_23, %c0_24] : memref<8x128xf32, #tpu.memory_space<vmem>>, vector<8x128xf32>
    tpu.vector_store %arg10[%c0_23, %c0_24], %29 {strides = array<i32>} : memref<8x128xf32, #tpu.memory_space<vmem>>, vector<8x128xf32>,
    return
  }
  func.func @transform_0(%arg0: i32) -> (i32, i32) {
    %c0_i32 = arith.constant 0 : i32
    %c0_i32_0 = arith.constant 0 : i32
    return %arg0, %c0_i32 : i32, i32
  }
  func.func @transform_1(%arg0: i32) -> (i32, i32) {
    %c0_i32 = arith.constant 0 : i32
    %c0_i32_0 = arith.constant 0 : i32
    %c0_i32_1 = arith.constant 0 : i32
    return %c0_i32, %c0_i32_0 : i32, i32
  }
  func.func @transform_2(%arg0: i32) -> (i32, i32) {
    %c0_i32 = arith.constant 0 : i32
    %c0_i32_0 = arith.constant 0 : i32
    %c0_i32_1 = arith.constant 0 : i32
    return %c0_i32, %c0_i32_0 : i32, i32
  }
  func.func @transform_3(%arg0: i32) -> (i32, i32) {
    %c0_i32 = arith.constant 0 : i32
    %c0_i32_0 = arith.constant 0 : i32
    %c0_i32_1 = arith.constant 0 : i32
    return %c0_i32, %c0_i32_0 : i32, i32
  }
  func.func @transform_4(%arg0: i32) -> (i32, i32) {
    %c0_i32 = arith.constant 0 : i32
    %c0_i32_0 = arith.constant 0 : i32
    %c0_i32_1 = arith.constant 0 : i32
    return %c0_i32, %c0_i32_0 : i32, i32
  }
  func.func @transform_5(%arg0: i32) -> (i32, i32) {
    %c0_i32 = arith.constant 0 : i32
    %c0_i32_0 = arith.constant 0 : i32
    %c0_i32_1 = arith.constant 0 : i32
    return %c0_i32, %c0_i32_0 : i32, i32
  }
  func.func @transform_6(%arg0: i32) -> (i32, i32) {
    %c0_i32 = arith.constant 0 : i32
    %c0_i32_0 = arith.constant 0 : i32
    %c0_i32_1 = arith.constant 0 : i32
    return %c0_i32, %c0_i32_0 : i32, i32
  }
  func.func @transform_7(%arg0: i32) -> (i32, i32) {
    %c0_i32 = arith.constant 0 : i32
    %c0_i32_0 = arith.constant 0 : i32
    %c0_i32_1 = arith.constant 0 : i32
    return %c0_i32, %c0_i32_0 : i32, i32
  }
  func.func @transform_8(%arg0: i32) -> (i32, i32) {
    %c0_i32 = arith.constant 0 : i32
    %c0_i32_0 = arith.constant 0 : i32
    %c0_i32_1 = arith.constant 0 : i32
    return %c0_i32, %c0_i32_0 : i32, i32
  }
  func.func @transform_9(%arg0: i32) -> (i32, i32) {
    %c0_i32 = arith.constant 0 : i32
    %c0_i32_0 = arith.constant 0 : i32
    return %arg0, %c0_i32 : i32, i32
  }
}

</mosaic_0001>

<llo_original>
// kernel: neural_network_forward.1
$region0: #{neural_network_forward.1}
  #allocation0 [shape = 'u32[]', space=smem, size = 0x4, offset = 0x4, fixed_abs, tag = 'smem constant byte address 0x4 - core index']
  #allocation1 [shape = 'u32[72,128]{1,0:T(1,128)}', space=vmem, size = 0x9000, scoped, tag = 'internal scratch']
  %s0 = inlined_call_operand.vmem [shape: bf16[8,32], index: 0, kind: input, shape index: {}]
  %s1 = inlined_call_operand.vmem [shape: bf16[32,128], index: 1, kind: input, shape index: {}]
  %s2 = inlined_call_operand.vmem [shape: f32[1,128], index: 2, kind: input, shape index: {}]
  %s3 = inlined_call_operand.vmem [shape: bf16[128,64], index: 3, kind: input, shape index: {}]
  %s4 = inlined_call_operand.vmem [shape: f32[1,64], index: 4, kind: input, shape index: {}]
  %s5 = inlined_call_operand.vmem [shape: bf16[64,32], index: 5, kind: input, shape index: {}]
  %s6 = inlined_call_operand.vmem [shape: f32[1,32], index: 6, kind: input, shape index: {}]
  %s7 = inlined_call_operand.vmem [shape: bf16[32,128], index: 7, kind: input, shape index: {}]
  %s8 = inlined_call_operand.vmem [shape: f32[1,128], index: 8, kind: input, shape index: {}]
  %s9 = inlined_call_operand.hbm [shape: f32[8,128], index: 9, kind: output, shape index: {}]
  %s10 = sld [smem:[#allocation0]]
  $region46: #{neural_network_forward.1} parent=0
    _
  %s12 = ssub.s32 1, %s10
  %s13 = scalar_select 0, %s12, %s10
  $region1: #{neural_network_forward.1} parent=0
    #allocation2 [shape = 'u8[4096]{0}', space=vmem, size = 0x1000, scoped, tag = 'output window, operand 0, single buffered']
    #allocation3 [shape = 's32[1]{0}', space=sflag, size = 0x4, scoped, tag = 'scoped memory for neural_network_forward.1']
    %14 = vsyncpa [#allocation3], 0
    // Predicated region
    $region2: #{neural_network_forward.1} parent=1 // pred_check
      _
    $region3: #{neural_network_forward.1} parent=1 // pred_check_branch
      %16 = sbr.rel (0) target = $region5
    $region4: #{neural_network_forward.1} parent=1 // pred_region
      _
    $region5: #{neural_network_forward.1} parent=1 // pred_fallthru
      _
    // Predicated region
    $region6: #{neural_network_forward.1} parent=1 // pred_check
      _
    $region7: #{neural_network_forward.1} parent=1 // pred_check_branch
      %18 = sbr.rel (0) target = $region9
    $region8: #{neural_network_forward.1} parent=1 // pred_region
      _
    $region9: #{neural_network_forward.1} parent=1 // pred_fallthru
      _
    // Predicated region
    $region10: #{neural_network_forward.1} parent=1 // pred_check
      _
    $region11: #{neural_network_forward.1} parent=1 // pred_check_branch
      %20 = sbr.rel (0) target = $region13
    $region12: #{neural_network_forward.1} parent=1 // pred_region
      _
    $region13: #{neural_network_forward.1} parent=1 // pred_fallthru
      _
    // Predicated region
    $region14: #{neural_network_forward.1} parent=1 // pred_check
      _
    $region15: #{neural_network_forward.1} parent=1 // pred_check_branch
      %22 = sbr.rel (0) target = $region17
    $region16: #{neural_network_forward.1} parent=1 // pred_region
      _
    $region17: #{neural_network_forward.1} parent=1 // pred_fallthru
      _
    // Predicated region
    $region18: #{neural_network_forward.1} parent=1 // pred_check
      _
    $region19: #{neural_network_forward.1} parent=1 // pred_check_branch
      %24 = sbr.rel (0) target = $region21
    $region20: #{neural_network_forward.1} parent=1 // pred_region
      _
    $region21: #{neural_network_forward.1} parent=1 // pred_fallthru
      _
    // Predicated region
    $region22: #{neural_network_forward.1} parent=1 // pred_check
      _
    $region23: #{neural_network_forward.1} parent=1 // pred_check_branch
      %26 = sbr.rel (0) target = $region25
    $region24: #{neural_network_forward.1} parent=1 // pred_region
      _
    $region25: #{neural_network_forward.1} parent=1 // pred_fallthru
      _
    // Predicated region
    $region26: #{neural_network_forward.1} parent=1 // pred_check
      _
    $region27: #{neural_network_forward.1} parent=1 // pred_check_branch
      %28 = sbr.rel (0) target = $region29
    $region28: #{neural_network_forward.1} parent=1 // pred_region
      _
    $region29: #{neural_network_forward.1} parent=1 // pred_fallthru
      _
    // Predicated region
    $region30: #{neural_network_forward.1} parent=1 // pred_check
      _
    $region31: #{neural_network_forward.1} parent=1 // pred_check_branch
      %30 = sbr.rel (0) target = $region33
    $region32: #{neural_network_forward.1} parent=1 // pred_region
      _
    $region33: #{neural_network_forward.1} parent=1 // pred_fallthru
      _
    // Predicated region
    $region34: #{neural_network_forward.1} parent=1 // pred_check
      _
    $region35: #{neural_network_forward.1} parent=1 // pred_check_branch
      %32 = sbr.rel (0) target = $region37
    $region36: #{neural_network_forward.1} parent=1 // pred_region
      _
    $region37: #{neural_network_forward.1} parent=1 // pred_fallthru
      _
    %v34 = vld [vmem:[%s0] sm:$0xf]
    %v35 = vld [vmem:[%s1] sm:$0xf]
    %v36 = vld [vmem:[%s1 + $0x4] sm:$0xf]
    %v37 = vld [vmem:[%s1 + $0x8] sm:$0xf]
    %v38 = vld [vmem:[%s1 + $0xc] sm:$0xf]
    %v39 = vld [vmem:[%s2] sm:$0x1]
    %v41 = vperm.slane %v39, 0
    %v47 = vunpack.c.l.b16 %v35
    %v48 = vunpack.c.l.b16 %v36
    %v49 = vunpack.c.l.b16 %v37
    %v50 = vunpack.c.l.b16 %v38
    %v51 = vpack.c.b16 %v48, %v47
    %v52 = vpack.c.b16 %v50, %v49
    %vm55 = vcmask 261120
    %v57 = vsel %vm55, %v34, 0
    %59 = vmatpush.bf16.msra.mxu0 0
    %60 = vmatpush.bf16.msra.mxu0 0
    %61 = vmatpush.bf16.msra.mxu0 0
    %62 = vmatpush.bf16.msra.mxu0 0
    %63 = vmatpush.bf16.msra.mxu0 0
    %64 = vmatpush.bf16.msra.mxu0 0
    %65 = vmatpush.bf16.msra.mxu0 %v52
    %66 = vmatpush.bf16.msra.mxu0 %v51
    %67 = vmatmul.bf16.gmra.mxu0 %v57
    %v68 = vpop.f32.mrf.mxu0
    %v69 = vadd.f32 %v41, %v68
    %v70 = vpop.f32.mrf.mxu0
    %71 = vdwg.mxu0
    %v72 = vmax.f32 %v69, 0.0
    %v73 = vpack.c.bf16 %v72, %v72
    %v74 = vld [vmem:[%s3] sm:$0xf]
    %v75 = vld [vmem:[%s3 + $0x4] sm:$0xf]
    %v76 = vld [vmem:[%s3 + $0x8] sm:$0xf]
    %v77 = vld [vmem:[%s3 + $0xc] sm:$0xf]
    %v78 = vld [vmem:[%s3 + $0x10] sm:$0xf]
    %v79 = vld [vmem:[%s3 + $0x14] sm:$0xf]
    %v80 = vld [vmem:[%s3 + $0x18] sm:$0xf]
    %v81 = vld [vmem:[%s3 + $0x1c] sm:$0xf]
    %v82 = vld [vmem:[%s3 + $0x20] sm:$0xf]
    %v83 = vld [vmem:[%s3 + $0x24] sm:$0xf]
    %v84 = vld [vmem:[%s3 + $0x28] sm:$0xf]
    %v85 = vld [vmem:[%s3 + $0x2c] sm:$0xf]
    %v86 = vld [vmem:[%s3 + $0x30] sm:$0xf]
    %v87 = vld [vmem:[%s3 + $0x34] sm:$0xf]
    %v88 = vld [vmem:[%s3 + $0x38] sm:$0xf]
    %v89 = vld [vmem:[%s3 + $0x3c] sm:$0xf]
    %v90 = vld [vmem:[%s4] sm:$0x1]
    %v92 = vperm.slane %v90, 0
    %v110 = vunpack.c.l.b16 %v74
    %v111 = vunpack.c.l.b16 %v75
    %v112 = vunpack.c.l.b16 %v76
    %v113 = vunpack.c.l.b16 %v77
    %v114 = vunpack.c.l.b16 %v78
    %v115 = vunpack.c.l.b16 %v79
    %v116 = vunpack.c.l.b16 %v80
    %v117 = vunpack.c.l.b16 %v81
    %v118 = vunpack.c.l.b16 %v82
    %v119 = vunpack.c.l.b16 %v83
    %v120 = vunpack.c.l.b16 %v84
    %v121 = vunpack.c.l.b16 %v85
    %v122 = vunpack.c.l.b16 %v86
    %v123 = vunpack.c.l.b16 %v87
    %v124 = vunpack.c.l.b16 %v88
    %v125 = vunpack.c.l.b16 %v89
    %v126 = vpack.c.b16 %v111, %v110
    %v127 = vpack.c.b16 %v113, %v112
    %v128 = vpack.c.b16 %v115, %v114
    %v129 = vpack.c.b16 %v117, %v116
    %v130 = vpack.c.b16 %v119, %v118
    %v131 = vpack.c.b16 %v121, %v120
    %v132 = vpack.c.b16 %v123, %v122
    %v133 = vpack.c.b16 %v125, %v124
    %142 = vmatpush.bf16.msra.mxu0 %v133
    %143 = vmatpush.bf16.msra.mxu0 %v132
    %144 = vmatpush.bf16.msra.mxu0 %v131
    %145 = vmatpush.bf16.msra.mxu0 %v130
    %146 = vmatpush.bf16.msra.mxu0 %v129
    %147 = vmatpush.bf16.msra.mxu0 %v128
    %148 = vmatpush.bf16.msra.mxu0 %v127
    %149 = vmatpush.bf16.msra.mxu0 %v126
    %150 = vmatmul.bf16.gmra.mxu0 %v73
    %v151 = vpop.f32.mrf.mxu0
    %v152 = vadd.f32 %v92, %v151
    %v153 = vpop.f32.mrf.mxu0
    %154 = vdwg.mxu0
    %v155 = vmax.f32 %v152, 0.0
    %v156 = vpack.c.bf16 %v155, %v155
    %v157 = vld [vmem:[%s5] sm:$0xf]
    %v158 = vld [vmem:[%s5 + $0x4] sm:$0xf]
    %v159 = vld [vmem:[%s5 + $0x8] sm:$0xf]
    %v160 = vld [vmem:[%s5 + $0xc] sm:$0xf]
    %v161 = vld [vmem:[%s5 + $0x10] sm:$0xf]
    %v162 = vld [vmem:[%s5 + $0x14] sm:$0xf]
    %v163 = vld [vmem:[%s5 + $0x18] sm:$0xf]
    %v164 = vld [vmem:[%s5 + $0x1c] sm:$0xf]
    %v165 = vld [vmem:[%s6] sm:$0x1]
    %v167 = vperm.slane %v165, 0
    %v177 = vunpack.c.l.b16 %v157
    %v178 = vunpack.c.l.b16 %v158
    %v179 = vunpack.c.l.b16 %v159
    %v180 = vunpack.c.l.b16 %v160
    %v181 = vunpack.c.l.b16 %v161
    %v182 = vunpack.c.l.b16 %v162
    %v183 = vunpack.c.l.b16 %v163
    %v184 = vunpack.c.l.b16 %v164
    %v185 = vpack.c.b16 %v178, %v177
    %v186 = vpack.c.b16 %v180, %v179
    %v187 = vpack.c.b16 %v182, %v181
    %v188 = vpack.c.b16 %v184, %v183
    %vm193 = vcmask 523264
    %v195 = vsel %vm193, %v156, 0
    %197 = vmatpush.bf16.msra.mxu0 0
    %198 = vmatpush.bf16.msra.mxu0 0
    %199 = vmatpush.bf16.msra.mxu0 0
    %200 = vmatpush.bf16.msra.mxu0 0
    %201 = vmatpush.bf16.msra.mxu0 %v188
    %202 = vmatpush.bf16.msra.mxu0 %v187
    %203 = vmatpush.bf16.msra.mxu0 %v186
    %204 = vmatpush.bf16.msra.mxu0 %v185
    %205 = vmatmul.bf16.gmra.mxu0 %v195
    %v206 = vpop.f32.mrf.mxu0
    %v207 = vadd.f32 %v167, %v206
    %v208 = vpop.f32.mrf.mxu0
    %209 = vdwg.mxu0
    %v210 = vmax.f32 %v207, 0.0
    %v211 = vpack.c.bf16 %v210, %v210
    %v212 = vld [vmem:[%s7] sm:$0xf]
    %v213 = vld [vmem:[%s7 + $0x4] sm:$0xf]
    %v214 = vld [vmem:[%s7 + $0x8] sm:$0xf]
    %v215 = vld [vmem:[%s7 + $0xc] sm:$0xf]
    %v216 = vld [vmem:[%s8] sm:$0x1]
    %v218 = vperm.slane %v216, 0
    %v224 = vunpack.c.l.b16 %v212
    %v225 = vunpack.c.l.b16 %v213
    %v226 = vunpack.c.l.b16 %v214
    %v227 = vunpack.c.l.b16 %v215
    %v228 = vpack.c.b16 %v225, %v224
    %v229 = vpack.c.b16 %v227, %v226
    %v233 = vsel %vm55, %v211, 0
    %235 = vmatpush.bf16.msra.mxu0 0
    %236 = vmatpush.bf16.msra.mxu0 0
    %237 = vmatpush.bf16.msra.mxu0 0
    %238 = vmatpush.bf16.msra.mxu0 0
    %239 = vmatpush.bf16.msra.mxu0 0
    %240 = vmatpush.bf16.msra.mxu0 0
    %241 = vmatpush.bf16.msra.mxu0 %v229
    %242 = vmatpush.bf16.msra.mxu0 %v228
    %243 = vmatmul.bf16.gmra.mxu0 %v233
    %v244 = vpop.f32.mrf.mxu0
    %v245 = vadd.f32 %v218, %v244
    %v246 = vpop.f32.mrf.mxu0
    %247 = vdwg.mxu0
    %248 = vst [vmem:[#allocation2] sm:$0xff] %v245
    // Predicated region
    $region38: #{neural_network_forward.1} parent=1 // pred_check
      _
    $region39: #{neural_network_forward.1} parent=1 // pred_check_branch
      %250 = sbr.rel (0) target = $region41
    $region40: #{neural_network_forward.1} parent=1 // pred_region
      %252 = vsyncadd [#allocation3], 0
      %s254 = sshll.u32 [#allocation2], 4
      %s255 = int_to_ptr.vmem [resolvable:$true] %s254
      %s256 = sshll.u32 %s9, 4
      %s257 = int_to_ptr.hbm [resolvable:$true] %s256
      %259 = dma.vmem_to_hbm [thread:$0]  %s255, 128, %s257, [#allocation3]
    $region41: #{neural_network_forward.1} parent=1 // pred_fallthru
      _
    // Predicated region
    $region42: #{neural_network_forward.1} parent=1 // pred_check
      _
    $region43: #{neural_network_forward.1} parent=1 // pred_check_branch
      %261 = sbr.rel (0) target = $region45
    $region44: #{neural_network_forward.1} parent=1 // pred_region
      %263 = dma.done [#allocation3], 128
    $region45: #{neural_network_forward.1} parent=1 // pred_fallthru
      _
    %264 = vsyncpa [#allocation3], 1

</llo_original>
